<compile_context>
chip_gen: v5e
topology: v5e:2x2
jax: 0.10.0
libtpu: 0.0.40
codegen_flags: <defaults>
</compile_context>

<pallas_src>
import functools

import jax
import jax.numpy as jnp
import numpy as np
from jax.experimental import pallas as pl
from jax.experimental.pallas import tpu as pltpu

LANES = 128
SUBLANES = 8
ROW_ALIGN = SUBLANES * LANES          # 1024 elems: keeps rows % 8 == 0
DEFAULT_BLOCK_ROWS = 2048             # 2048 x 128 f32 = 1 MiB per input block
SMOOTH = 1e-5


def _dice_loss_kernel(x_ref, t_ref, out_ref, acc_pt, acc_den, *,
                      block_rows, steps_per_chunk, valid_rows, needs_mask):
    """Grid = (chunks [parallel], steps-per-chunk [arbitrary reduction]).

    x_ref, t_ref : VMEM (block_rows, 128) input tiles (native dtype)
    out_ref      : VMEM (1, 2, 8, 128) per-chunk partials
                   [:, 0] = sum(p*t) tiles, [:, 1] = sum(p+t) tiles
    acc_pt/den   : VMEM (8, 128) f32 vector accumulators
    """
    c = pl.program_id(0)
    i = pl.program_id(1)
    groups = block_rows // SUBLANES

    @pl.when(i == 0)
    def _init():
        acc_pt[...] = jnp.zeros_like(acc_pt)
        acc_den[...] = jnp.zeros_like(acc_den)

    x = x_ref[...].astype(jnp.float32)
    t = t_ref[...].astype(jnp.float32)
    # Exact sigmoid (EUP exp + divide).  On v5e, if EUP/VALU ever binds, swap
    # for: p = pl.reciprocal(1.0 + jnp.exp(-x), approx=True)
    p = jax.nn.sigmoid(x)

    def _accumulate(pv, tv):
        prod = pv * tv
        den = pv + tv
        # Fold (block_rows, 128) -> (8, 128): native (8,128) tile grouping,
        # pure element-wise vreg adds, no cross-lane work per step.
        acc_pt[...] += jnp.sum(prod.reshape(groups, SUBLANES, LANES), axis=0)
        acc_den[...] += jnp.sum(den.reshape(groups, SUBLANES, LANES), axis=0)

    if needs_mask:
        global_block = c * steps_per_chunk + i
        is_edge = (global_block + 1) * block_rows > valid_rows

        @pl.when(jnp.logical_not(is_edge))
        def _fast():                      # full interior block — no mask cost
            _accumulate(p, t)

        @pl.when(is_edge)
        def _masked():                    # partial / duplicated edge block
            row_ids = (global_block * block_rows
                       + jax.lax.broadcasted_iota(jnp.int32, p.shape, 0))
            valid = row_ids < valid_rows
            # Mask BEFORE the multiply/accumulate: the tail of an edge block
            # is undefined VMEM and may contain NaN/Inf.
            _accumulate(jnp.where(valid, p, 0.0), jnp.where(valid, t, 0.0))
    else:
        _accumulate(p, t)

    @pl.when(i == pl.num_programs(1) - 1)
    def _finalize():
        out_ref[0, 0, :, :] = acc_pt[...]
        out_ref[0, 1, :, :] = acc_den[...]


def _tensorcores_per_chip():
    """Best-effort TensorCore count per chip (2 on v7x/megacore, else 1)."""
    try:
        info = pltpu.get_tpu_info()
        for attr in ("num_cores", "num_tensorcores", "tensorcores_per_chip",
                     "cores_per_chip", "core_count"):
            v = getattr(info, attr, None)
            if isinstance(v, int) and v > 0:
                return min(v, 2)
    except Exception:
        pass
    try:
        v = getattr(jax.devices()[0], "num_cores", None)
        if isinstance(v, int) and v > 0:
            return min(v, 2)
    except Exception:
        pass
    return 2   # the parallel axis is harmless on single-TC chips


def dice_loss(inputs, targets, *, block_rows=DEFAULT_BLOCK_ROWS, smooth=SMOOTH):
    """Pallas TPU DiceLoss.forward (matches the PyTorch module semantics).

    Inputs keep their native dtype (cast to f32 in-kernel); pass bf16
    logits/targets to halve HBM traffic on this bandwidth-bound reduction.
    """
    x = jnp.reshape(inputs, (-1,))
    t = jnp.reshape(targets, (-1,))
    n = x.shape[0]

    rem = n % ROW_ALIGN
    if rem:
        # Pad so rows % 8 == 0 (at most 1023 extra elems): padded logits get
        # a large negative (sigmoid -> 0) and padded targets 0, so they
        # contribute exactly nothing and need no extra masking.
        pad = ROW_ALIGN - rem
        x = jnp.pad(x, (0, pad), constant_values=-1e9)
        t = jnp.pad(t, (0, pad), constant_values=0)
    rows = x.shape[0] // LANES

    x2 = x.reshape(rows, LANES)
    t2 = t.reshape(rows, LANES)

    block_rows = max(SUBLANES, (block_rows // SUBLANES) * SUBLANES)
    block_rows = min(block_rows, rows)              # full-dim block if small
    total_blocks = (rows + block_rows - 1) // block_rows

    # Leading "parallel" axis so multi-TensorCore chips (v7x) reduce the two
    # halves concurrently; single-TC chips just use one chunk.
    nchunks = max(1, min(_tensorcores_per_chip(), total_blocks))
    steps = (total_blocks + nchunks - 1) // nchunks
    needs_mask = (nchunks * steps * block_rows) != rows

    def in_map(c, i):
        # Clamp so the block index never points past the array; duplicated /
        # partial edge blocks are zeroed by the in-kernel row mask.
        return (jnp.minimum(c * steps + i, total_blocks - 1), 0)

    kernel = functools.partial(
        _dice_loss_kernel,
        block_rows=block_rows,
        steps_per_chunk=steps,
        valid_rows=rows,
        needs_mask=needs_mask,
    )

    partial = pl.pallas_call(
        kernel,
        out_shape=jax.ShapeDtypeStruct((nchunks, 2, SUBLANES, LANES),
                                       jnp.float32),
        grid_spec=pltpu.PrefetchScalarGridSpec(
            num_scalar_prefetch=0,
            grid=(nchunks, steps),
            in_specs=[
                pl.BlockSpec((block_rows, LANES), in_map),
                pl.BlockSpec((block_rows, LANES), in_map),
            ],
            out_specs=pl.BlockSpec((1, 2, SUBLANES, LANES),
                                   lambda c, i: (c, 0, 0, 0)),
            scratch_shapes=[
                pltpu.VMEM((SUBLANES, LANES), jnp.float32),   # sum(p*t)
                pltpu.VMEM((SUBLANES, LANES), jnp.float32),   # sum(p+t)
            ],
        ),
        compiler_params=pltpu.CompilerParams(
            dimension_semantics=("parallel", "arbitrary"),
        ),
    )(x2, t2)

    # Tiny cross-chunk / cross-lane combine in plain JAX.
    inter = jnp.sum(partial[:, 0])
    denom = jnp.sum(partial[:, 1])
    dice = (2.0 * inter + smooth) / (denom + smooth)
    return 1.0 - dice


def _dice_loss_ref(inputs, targets, smooth=SMOOTH):
    p = jax.nn.sigmoid(inputs.astype(jnp.float32)).reshape(-1)
    t = targets.astype(jnp.float32).reshape(-1)
    inter = jnp.sum(p * t)
    dice = (2.0 * inter + smooth) / (jnp.sum(p) + jnp.sum(t) + smooth)
    return 1.0 - dice


if __name__ == "__main__":
    key = jax.random.PRNGKey(0)
    k1, k2 = jax.random.split(key)

    # Synthetic NCHW logits + binary mask, as DiceLoss sees in training.
    x = jax.random.normal(k1, (2, 4, 16, 16), dtype=jnp.float32)
    tgt = (jax.random.uniform(k2, (2, 4, 16, 16)) > 0.5).astype(jnp.float32)

    out = jax.block_until_ready(dice_loss(x, tgt))
    ref = jax.block_until_ready(_dice_loss_ref(x, tgt))

    np.testing.assert_allclose(np.asarray(out), np.asarray(ref),
                               rtol=1e-5, atol=1e-5)
    print("KERNEL_OK")
</pallas_src>

<mosaic_0001>
module attributes {stable_mosaic.version = 11 : i64} {
  func.func @_dice_loss_kernel(%arg0: i32, %arg1: i32, %arg2: memref<16x128xf32, #tpu.memory_space<vmem>>, %arg3: memref<16x128xf32, #tpu.memory_space<vmem>>, %arg4: memref<1x2x8x128xf32, #tpu.memory_space<vmem>>, %arg5: memref<8x128xf32, #tpu.memory_space<vmem>>, %arg6: memref<8x128xf32, #tpu.memory_space<vmem>>) attributes {dimension_semantics = [#tpu.dimension_semantics<parallel>, #tpu.dimension_semantics<arbitrary>], iteration_bounds = array<i64: 1, 1>, scalar_prefetch = 0 : i64, scratch_operands = 2 : i64, tpu.core_type = #tpu.core_type<tc>, window_params = [{transform_indices = @transform_0, window_bounds = array<i64: 16, 128>}, {transform_indices = @transform_1, window_bounds = array<i64: 16, 128>}, {transform_indices = @transform_2, window_bounds = array<i64: 1, 2, 8, 128>}]} {
    %c0_i32 = arith.constant 0 : i32
    %0 = arith.cmpi eq, %arg1, %c0_i32 : i32
    %1 = arith.extui %0 : i1 to i32
    %c0_i32_0 = arith.constant 0 : i32
    %2 = arith.cmpi ne, %1, %c0_i32_0 : i32
    scf.if %2 {
      %cst_16 = arith.constant 0.000000e+00 : f32
      %25 = vector.broadcast %cst_16 : f32 to vector<8x128xf32>
      %c0_17 = arith.constant 0 : index
      %c0_18 = arith.constant 0 : index
      %26 = vector.load %arg5[%c0_17, %c0_18] : memref<8x128xf32, #tpu.memory_space<vmem>>, vector<8x128xf32>
      tpu.vector_store %arg5[%c0_17, %c0_18], %25 {strides = array<i32>} : memref<8x128xf32, #tpu.memory_space<vmem>>, vector<8x128xf32>,
      %cst_19 = arith.constant 0.000000e+00 : f32
      %27 = vector.broadcast %cst_19 : f32 to vector<8x128xf32>
      %c0_20 = arith.constant 0 : index
      %c0_21 = arith.constant 0 : index
      %28 = vector.load %arg6[%c0_20, %c0_21] : memref<8x128xf32, #tpu.memory_space<vmem>>, vector<8x128xf32>
      tpu.vector_store %arg6[%c0_20, %c0_21], %27 {strides = array<i32>} : memref<8x128xf32, #tpu.memory_space<vmem>>, vector<8x128xf32>,
    } else {
    }
    %c0 = arith.constant 0 : index
    %c0_1 = arith.constant 0 : index
    %3 = vector.load %arg2[%c0, %c0_1] : memref<16x128xf32, #tpu.memory_space<vmem>>, vector<16x128xf32>
    %c0_2 = arith.constant 0 : index
    %c0_3 = arith.constant 0 : index
    %4 = vector.load %arg3[%c0_2, %c0_3] : memref<16x128xf32, #tpu.memory_space<vmem>>, vector<16x128xf32>
    %5 = arith.negf %3 : vector<16x128xf32>
    %6 = math.exp %5 : vector<16x128xf32>
    %cst = arith.constant 1.000000e+00 : f32
    %7 = vector.broadcast %cst : f32 to vector<16x128xf32>
    %8 = arith.addf %7, %6 : vector<16x128xf32>
    %9 = arith.divf %7, %8 : vector<16x128xf32>
    %10 = arith.mulf %9, %4 : vector<16x128xf32>
    %11 = arith.addf %9, %4 : vector<16x128xf32>
    %c0_4 = arith.constant 0 : index
    %c0_5 = arith.constant 0 : index
    %12 = vector.load %arg5[%c0_4, %c0_5] : memref<8x128xf32, #tpu.memory_space<vmem>>, vector<8x128xf32>
    %13 = vector.shape_cast %10 : vector<16x128xf32> to vector<2x8x128xf32>
    %cst_6 = arith.constant dense<0.000000e+00> : vector<8x128xf32>
    %14 = vector.multi_reduction <add>, %13, %cst_6 [0] : vector<2x8x128xf32> to vector<8x128xf32>
    %15 = arith.addf %12, %14 : vector<8x128xf32>
    %c0_7 = arith.constant 0 : index
    %c0_8 = arith.constant 0 : index
    %16 = vector.load %arg5[%c0_7, %c0_8] : memref<8x128xf32, #tpu.memory_space<vmem>>, vector<8x128xf32>
    tpu.vector_store %arg5[%c0_7, %c0_8], %15 {strides = array<i32>} : memref<8x128xf32, #tpu.memory_space<vmem>>, vector<8x128xf32>,
    %c0_9 = arith.constant 0 : index
    %c0_10 = arith.constant 0 : index
    %17 = vector.load %arg6[%c0_9, %c0_10] : memref<8x128xf32, #tpu.memory_space<vmem>>, vector<8x128xf32>
    %18 = vector.shape_cast %11 : vector<16x128xf32> to vector<2x8x128xf32>
    %cst_11 = arith.constant dense<0.000000e+00> : vector<8x128xf32>
    %19 = vector.multi_reduction <add>, %18, %cst_11 [0] : vector<2x8x128xf32> to vector<8x128xf32>
    %20 = arith.addf %17, %19 : vector<8x128xf32>
    %c0_12 = arith.constant 0 : index
    %c0_13 = arith.constant 0 : index
    %21 = vector.load %arg6[%c0_12, %c0_13] : memref<8x128xf32, #tpu.memory_space<vmem>>, vector<8x128xf32>
    tpu.vector_store %arg6[%c0_12, %c0_13], %20 {strides = array<i32>} : memref<8x128xf32, #tpu.memory_space<vmem>>, vector<8x128xf32>,
    %c0_i32_14 = arith.constant 0 : i32
    %22 = arith.cmpi eq, %arg1, %c0_i32_14 : i32
    %23 = arith.extui %22 : i1 to i32
    %c0_i32_15 = arith.constant 0 : i32
    %24 = arith.cmpi ne, %23, %c0_i32_15 : i32
    scf.if %24 {
      %c0_16 = arith.constant 0 : index
      %c0_17 = arith.constant 0 : index
      %25 = vector.load %arg5[%c0_16, %c0_17] : memref<8x128xf32, #tpu.memory_space<vmem>>, vector<8x128xf32>
      %c0_18 = arith.constant 0 : index
      %c0_19 = arith.constant 0 : index
      %c0_20 = arith.constant 0 : index
      %c0_21 = arith.constant 0 : index
      %26 = vector.load %arg4[%c0_18, %c0_19, %c0_20, %c0_21] : memref<1x2x8x128xf32, #tpu.memory_space<vmem>>, vector<1x1x8x128xf32>
      %27 = vector.shape_cast %26 : vector<1x1x8x128xf32> to vector<8x128xf32>
      %28 = vector.shape_cast %25 : vector<8x128xf32> to vector<1x1x8x128xf32>
      tpu.vector_store %arg4[%c0_18, %c0_19, %c0_20, %c0_21], %28 {strides = array<i32>} : memref<1x2x8x128xf32, #tpu.memory_space<vmem>>, vector<1x1x8x128xf32>,
      %c0_22 = arith.constant 0 : index
      %c0_23 = arith.constant 0 : index
      %29 = vector.load %arg6[%c0_22, %c0_23] : memref<8x128xf32, #tpu.memory_space<vmem>>, vector<8x128xf32>
      %c0_24 = arith.constant 0 : index
      %c1 = arith.constant 1 : index
      %c0_25 = arith.constant 0 : index
      %c0_26 = arith.constant 0 : index
      %30 = vector.load %arg4[%c0_24, %c1, %c0_25, %c0_26] : memref<1x2x8x128xf32, #tpu.memory_space<vmem>>, vector<1x1x8x128xf32>
      %31 = vector.shape_cast %30 : vector<1x1x8x128xf32> to vector<8x128xf32>
      %32 = vector.shape_cast %29 : vector<8x128xf32> to vector<1x1x8x128xf32>
      tpu.vector_store %arg4[%c0_24, %c1, %c0_25, %c0_26], %32 {strides = array<i32>} : memref<1x2x8x128xf32, #tpu.memory_space<vmem>>, vector<1x1x8x128xf32>,
    } else {
    }
    return
  }
  func.func @transform_0(%arg0: i32, %arg1: i32) -> (i32, i32) {
    %c1_i32 = arith.constant 1 : i32
    %0 = arith.muli %arg0, %c1_i32 : i32
    %1 = arith.addi %0, %arg1 : i32
    %c0_i32 = arith.constant 0 : i32
    %2 = arith.minsi %1, %c0_i32 : i32
    %c0_i32_0 = arith.constant 0 : i32
    %c0_i32_1 = arith.constant 0 : i32
    return %2, %c0_i32_0 : i32, i32
  }
  func.func @transform_1(%arg0: i32, %arg1: i32) -> (i32, i32) {
    %c1_i32 = arith.constant 1 : i32
    %0 = arith.muli %arg0, %c1_i32 : i32
    %1 = arith.addi %0, %arg1 : i32
    %c0_i32 = arith.constant 0 : i32
    %2 = arith.minsi %1, %c0_i32 : i32
    %c0_i32_0 = arith.constant 0 : i32
    %c0_i32_1 = arith.constant 0 : i32
    return %2, %c0_i32_0 : i32, i32
  }
  func.func @transform_2(%arg0: i32, %arg1: i32) -> (i32, i32, i32, i32) {
    %c0_i32 = arith.constant 0 : i32
    %c0_i32_0 = arith.constant 0 : i32
    %c0_i32_1 = arith.constant 0 : i32
    %c0_i32_2 = arith.constant 0 : i32
    return %arg0, %c0_i32, %c0_i32_0, %c0_i32_1 : i32, i32, i32, i32
  }
}

</mosaic_0001>

<llo_original>
// kernel: tpu_custom_call.1
$region0: #{tpu_custom_call.1}
  #allocation0 [shape = 'u32[]', space=smem, size = 0x4, offset = 0x4, fixed_abs, tag = 'smem constant byte address 0x4 - core index']
  #allocation1 [shape = 'u32[72,128]{1,0:T(1,128)}', space=vmem, size = 0x9000, scoped, tag = 'internal scratch']
  #allocation2 [shape = 'f32[8,128]{1,0:T(8,128)}', space=vmem, size = 0x1000, scoped, tag = 'scratch operand']
  #allocation3 [shape = 'f32[8,128]{1,0:T(8,128)}', space=vmem, size = 0x1000, scoped, tag = 'scratch operand']
  %s0 = inlined_call_operand.hbm [shape: f32[16,128], index: 0, kind: input, shape index: {}]
  %s1 = inlined_call_operand.hbm [shape: f32[16,128], index: 1, kind: input, shape index: {}]
  %s2 = inlined_call_operand.hbm [shape: f32[1,2,8,128], index: 2, kind: output, shape index: {}]
  %s3 = sld [smem:[#allocation0]]
  $region34: #{tpu_custom_call.1} parent=0
    _
  %s5 = ssub.s32 1, %s3
  %s6 = scalar_select 0, %s5, %s3
  $region1: #{tpu_custom_call.1} parent=0
    #allocation4 [shape = 'u8[8192]{0}', space=vmem, size = 0x2000, scoped, tag = 'input window, operand 0, single buffered']
    #allocation5 [shape = 's32[1]{0}', space=sflag, size = 0x4, scoped, tag = 'scoped memory for tpu_custom_call.1']
    #allocation6 [shape = 's32[1]{0}', space=sflag, size = 0x4, scoped, tag = 'scoped memory for tpu_custom_call.1']
    #allocation7 [shape = 'u8[8192]{0}', space=vmem, size = 0x2000, scoped, tag = 'input window, operand 1, single buffered']
    #allocation8 [shape = 's32[1]{0}', space=sflag, size = 0x4, scoped, tag = 'scoped memory for tpu_custom_call.1']
    #allocation9 [shape = 'u8[8192]{0}', space=vmem, size = 0x2000, scoped, tag = 'output window, operand 0, single buffered']
    %7 = vsyncpa [#allocation5], 0
    %8 = vsyncpa [#allocation8], 0
    %9 = vsyncpa [#allocation6], 0
    // Predicated region
    $region2: #{tpu_custom_call.1} parent=1 // pred_check
      _
    $region3: #{tpu_custom_call.1} parent=1 // pred_check_branch
      %11 = sbr.rel (0) target = $region5
    $region4: #{tpu_custom_call.1} parent=1 // pred_region
      %s12 = sadd.s32 0, 0
      %p13 = scmp.lt.s32.totalorder %s12, 0
      %s14 = scalar_select %p13, %s12, 0
      %s15 = smul.u32 2, %s14
      %17 = vsyncadd [#allocation5], 0
      %s18 = smul.addr %s15, 8
      %s19 = scalar_lea.hbm %s0, %s18
      %s20 = sshll.u32 %s19, 4
      %s21 = int_to_ptr.hbm [resolvable:$true] %s20
      %s22 = sshll.u32 [#allocation4], 4
      %s23 = int_to_ptr.vmem [resolvable:$true] %s22
      %28 = dma.hbm_to_vmem [thread:$0]  %s21, 256, %s23, [#allocation5], 128, 128, 8
    $region5: #{tpu_custom_call.1} parent=1 // pred_fallthru
      _
    // Predicated region
    $region6: #{tpu_custom_call.1} parent=1 // pred_check
      _
    $region7: #{tpu_custom_call.1} parent=1 // pred_check_branch
      %30 = sbr.rel (0) target = $region9
    $region8: #{tpu_custom_call.1} parent=1 // pred_region
      %s31 = sadd.s32 0, 0
      %p32 = scmp.lt.s32.totalorder %s31, 0
      %s33 = scalar_select %p32, %s31, 0
      %s34 = smul.u32 2, %s33
      %36 = vsyncadd [#allocation8], 0
      %s37 = smul.addr %s34, 8
      %s38 = scalar_lea.hbm %s1, %s37
      %s39 = sshll.u32 %s38, 4
      %s40 = int_to_ptr.hbm [resolvable:$true] %s39
      %s41 = sshll.u32 [#allocation7], 4
      %s42 = int_to_ptr.vmem [resolvable:$true] %s41
      %47 = dma.hbm_to_vmem [thread:$0]  %s40, 256, %s42, [#allocation8], 128, 128, 8
    $region9: #{tpu_custom_call.1} parent=1 // pred_fallthru
      _
    // Predicated region
    $region10: #{tpu_custom_call.1} parent=1 // pred_check
      _
    $region11: #{tpu_custom_call.1} parent=1 // pred_check_branch
      %49 = sbr.rel (0) target = $region13
    $region12: #{tpu_custom_call.1} parent=1 // pred_region
      %51 = dma.done [#allocation5], 256
    $region13: #{tpu_custom_call.1} parent=1 // pred_fallthru
      _
    // Predicated region
    $region14: #{tpu_custom_call.1} parent=1 // pred_check
      _
    $region15: #{tpu_custom_call.1} parent=1 // pred_check_branch
      %53 = sbr.rel (0) target = $region17
    $region16: #{tpu_custom_call.1} parent=1 // pred_region
      %55 = dma.done [#allocation8], 256
    $region17: #{tpu_custom_call.1} parent=1 // pred_fallthru
      _
    %s56 = sadd.s32 0, 0
    %p57 = scmp.lt.s32.totalorder %s56, 0
    %s58 = scalar_select %p57, %s56, 0
    %s59 = smul.u32 2, %s58
    %s60 = sadd.s32 0, 0
    %p61 = scmp.lt.s32.totalorder %s60, 0
    %s62 = scalar_select %p61, %s60, 0
    %s63 = smul.u32 2, %s62
    %p64 = scmp.eq.s32.totalorder 0, 0
    // Predicated region
    $region18: #{tpu_custom_call.1} parent=1 // pred_check
      %p65 = pneg %p64
    $region19: #{tpu_custom_call.1} parent=1 // pred_check_branch
      %67 = sbr.rel (%p65) target = $region21
    $region20: #{tpu_custom_call.1} parent=1 // pred_region
      %68 = vst [vmem:[#allocation2] sm:$0xff] 0.0
      %69 = vst [vmem:[#allocation3] sm:$0xff] 0.0
    $region21: #{tpu_custom_call.1} parent=1 // pred_fallthru
      _
    %v70 = vld [vmem:[#allocation4] sm:$0xff]
    %v71 = vld [vmem:[#allocation4 + $0x8] sm:$0xff]
    %v72 = vld [vmem:[#allocation7] sm:$0xff]
    %v73 = vld [vmem:[#allocation7 + $0x8] sm:$0xff]
    %v74 = vxor.u32 %v70, 2147483648
    %v75 = vxor.u32 %v71, 2147483648
    %v76 = vmul.f32 %v74, 1.442695
    %v77 = vpow.pop %v76
    %v78 = vmul.f32 %v75, 1.442695
    %v79 = vpow.pop %v78
    %v80 = vadd.f32 %v77, 1.0
    %v81 = vadd.f32 %v79, 1.0
    %v82 = vrcp.pop %v80
    %v83 = vmul.f32 %v80, %v82
    %v84 = vsub.f32 1.0, %v83
    %v85 = vmul.f32 %v82, %v84
    %v86 = vadd.f32 %v82, %v85
    %vm87 = vweird.f32 %v80
    %vm88 = vweird.f32 %v82
    %vm89 = vmor %vm87, %vm88
    %v90 = vsel %vm89, %v82, %v86
    %v91 = vand.u32 2147483647, %v80
    %vm92 = vcmp.eq.f32.partialorder %v91, 8.507059e+37
    %v93 = vand.u32 %v80, 2147483648
    %v94 = vor.u32 1.1754944e-38, %v93
    %v95 = vsel %vm92, %v94, %v90
    %v96 = vmul.f32 1.0, %v95
    %v97 = vrcp.pop %v81
    %v98 = vmul.f32 %v81, %v97
    %v99 = vsub.f32 1.0, %v98
    %v100 = vmul.f32 %v97, %v99
    %v101 = vadd.f32 %v97, %v100
    %vm102 = vweird.f32 %v81
    %vm103 = vweird.f32 %v97
    %vm104 = vmor %vm102, %vm103
    %v105 = vsel %vm104, %v97, %v101
    %v106 = vand.u32 2147483647, %v81
    %vm107 = vcmp.eq.f32.partialorder %v106, 8.507059e+37
    %v108 = vand.u32 %v81, 2147483648
    %v109 = vor.u32 1.1754944e-38, %v108
    %v110 = vsel %vm107, %v109, %v105
    %v111 = vmul.f32 1.0, %v110
    %v112 = vmul.f32 %v96, %v72
    %v113 = vmul.f32 %v111, %v73
    %v114 = vadd.f32 %v96, %v72
    %v115 = vadd.f32 %v111, %v73
    %v116 = vld [vmem:[#allocation2] sm:$0xff]
    %v117 = vadd.f32 %v112, %v113
    %v118 = vadd.f32 %v116, %v117
    %119 = vst [vmem:[#allocation2] sm:$0xff] %v118
    %v120 = vld [vmem:[#allocation3] sm:$0xff]
    %v121 = vadd.f32 %v114, %v115
    %v122 = vadd.f32 %v120, %v121
    %123 = vst [vmem:[#allocation3] sm:$0xff] %v122
    // Predicated region
    $region22: #{tpu_custom_call.1} parent=1 // pred_check
      %p124 = pneg %p64
    $region23: #{tpu_custom_call.1} parent=1 // pred_check_branch
      %126 = sbr.rel (%p124) target = $region25
    $region24: #{tpu_custom_call.1} parent=1 // pred_region
      %v127 = vld [vmem:[#allocation2] sm:$0xff]
      %128 = vst [vmem:[#allocation9] sm:$0xff] %v127
      %v129 = vld [vmem:[#allocation3] sm:$0xff]
      %s130 = scalar_lea.vmem [#allocation9], 8
      %131 = vst [vmem:[%s130] sm:$0xff] %v129
    $region25: #{tpu_custom_call.1} parent=1 // pred_fallthru
      _
    // Predicated region
    $region26: #{tpu_custom_call.1} parent=1 // pred_check
      _
    $region27: #{tpu_custom_call.1} parent=1 // pred_check_branch
      %133 = sbr.rel (0) target = $region29
    $region28: #{tpu_custom_call.1} parent=1 // pred_region
      %135 = vsyncadd [#allocation6], 0
      %s136 = sshll.u32 [#allocation9], 4
      %s137 = int_to_ptr.vmem [resolvable:$true] %s136
      %s138 = sshll.u32 %s2, 4
      %s139 = int_to_ptr.hbm [resolvable:$true] %s138
      %144 = dma.vmem_to_hbm [thread:$0]  %s137, 256, %s139, [#allocation6], 128, 128, 8
    $region29: #{tpu_custom_call.1} parent=1 // pred_fallthru
      _
    // Predicated region
    $region30: #{tpu_custom_call.1} parent=1 // pred_check
      _
    $region31: #{tpu_custom_call.1} parent=1 // pred_check_branch
      %146 = sbr.rel (0) target = $region33
    $region32: #{tpu_custom_call.1} parent=1 // pred_region
      %148 = dma.done [#allocation6], 256
    $region33: #{tpu_custom_call.1} parent=1 // pred_fallthru
      _
    %149 = vsyncpa [#allocation5], 1
    %150 = vsyncpa [#allocation8], 1
    %151 = vsyncpa [#allocation6], 1

</llo_original>
